<compile_context>
chip_gen: v6e
topology: v6e:2x2x1
jax: 0.10.0
libtpu: 0.0.40
codegen_flags: <defaults>
</compile_context>

<pallas_src>
import functools

import jax
import jax.numpy as jnp
from jax import lax
from jax.experimental import pallas as pl
from jax.experimental.pallas import tpu as pltpu


def _round_up(x: int, m: int) -> int:
    return ((x + m - 1) // m) * m


def _pick_vocab_tile(vocab: int, pref: int) -> int:
    """Largest multiple of 128 <= pref that divides vocab (so no V padding /
    output slicing); falls back to a padded tile if vocab % 128 != 0."""
    pref = max(128, (pref // 128) * 128)
    if vocab % 128 == 0:
        t = min(pref, vocab)
        while t >= 128:
            if vocab % t == 0:
                return t
            t -= 128
    return min(pref, _round_up(vocab, 128))


def prepare_lm_head_weight(norm_weight: jax.Array,
                           lm_head_weight: jax.Array,
                           *,
                           block_n: int = 768,
                           compute_dtype=jnp.bfloat16):
    """One-time, per-checkpoint weight prep (call at weight-load time, NOT per
    forward call): fold the RMSNorm gain into the weight, transpose to [H, V]
    so logits are lane-dense, cast to the MXU compute dtype, pad V to a tile
    multiple.  Returns (w_prepped [H, Vp], tn)."""
    V, H = lm_head_weight.shape
    tn = _pick_vocab_tile(V, block_n)
    Vp = _round_up(V, tn)
    # (g[h] * W[v, h]).T  ==  gain folded into the contraction dimension.
    w_t = (lm_head_weight.astype(jnp.float32)
           * norm_weight.astype(jnp.float32)[None, :]).T          # [H, V]
    w_t = w_t.astype(compute_dtype)
    if Vp != V:
        w_t = jnp.pad(w_t, ((0, 0), (0, Vp - V)))
    return w_t, tn


def _lmhead_kernel(x_ref, w_ref, o_ref, *, eps: float):
    # x_ref : (tm, H)   hidden tile (original dtype)
    # w_ref : (H,  tn)  gain-folded, transposed weight tile (bf16)
    # o_ref : (tm, tn)  logits tile
    # RMSNorm math in f32 on the VPU; cast only at the MXU input so the matmul
    # runs bf16 x bf16 with f32 accumulation.
    x = x_ref[...].astype(jnp.float32)
    var = jnp.mean(x * x, axis=-1, keepdims=True)                  # (tm, 1)
    normed = x * lax.rsqrt(var + eps)                              # gain already in w
    o_ref[...] = jnp.dot(
        normed.astype(w_ref.dtype), w_ref[...],
        preferred_element_type=jnp.float32,
    ).astype(o_ref.dtype)


def lm_head(hidden_states: jax.Array,
            w_prepped: jax.Array,
            *,
            vocab_size: int,
            block_n: int,
            eps: float = 1e-5,
            block_m: int = 128) -> jax.Array:
    """logits = RMSNorm(hidden_states) @ lm_head_weight.T using the prepped
    [H, Vp] gain-folded weight from prepare_lm_head_weight."""
    B, S, H = hidden_states.shape
    Hw, Vp = w_prepped.shape
    assert Hw == H, "hidden size mismatch between hidden_states and lm_head weight"
    assert Vp % block_n == 0, "prepped weight must be padded to a block_n multiple"

    N = B * S
    x = hidden_states.reshape(N, H)

    block_m = max(8, (block_m // 8) * 8)
    tm = min(block_m, _round_up(N, 8))       # token tile: multiple of 8 (f32 sublane)
    tn = block_n                              # vocab tile: multiple of 128 (lane)
    Np = _round_up(N, tm)
    if Np != N:
        # Padded zero rows are safe: rsqrt(eps) is finite, 0 * finite = 0.
        x = jnp.pad(x, ((0, Np - N), (0, 0)))

    # Vocab tiles OUTER (weight index depends only on this axis -> weight
    # streams from HBM once; leading "parallel" axis -> megacore shards the
    # weight stream across v7x's two TensorCores), token tiles INNER.
    grid = (Vp // tn, Np // tm)

    out_dtype = hidden_states.dtype
    vmem_est = 2 * (tm * H * x.dtype.itemsize
                    + H * tn * w_prepped.dtype.itemsize
                    + tm * tn * jnp.dtype(out_dtype).itemsize)
    vmem_limit = int(min(max(vmem_est + (4 << 20), 32 << 20), 112 << 20))

    out = pl.pallas_call(
        functools.partial(_lmhead_kernel, eps=eps),
        out_shape=jax.ShapeDtypeStruct((Np, Vp), out_dtype),
        grid_spec=pltpu.PrefetchScalarGridSpec(
            num_scalar_prefetch=0,
            grid=grid,
            in_specs=[
                pl.BlockSpec((tm, H), lambda j, i: (i, 0)),   # hidden: inner axis only
                pl.BlockSpec((H, tn), lambda j, i: (0, j)),   # weight: outer axis only
            ],
            out_specs=pl.BlockSpec((tm, tn), lambda j, i: (i, j)),
        ),
        compiler_params=pltpu.CompilerParams(
            dimension_semantics=("parallel", "parallel"),
            vmem_limit_bytes=vmem_limit,
        ),
    )(x, w_prepped)

    return out[:N, :vocab_size].reshape(B, S, vocab_size)


def _reference(hidden_states, norm_weight, lm_head_weight, eps):
    x = hidden_states.astype(jnp.float32)
    var = jnp.mean(x * x, axis=-1, keepdims=True)
    normed = x * lax.rsqrt(var + eps) * norm_weight.astype(jnp.float32)
    return jnp.einsum("bsh,vh->bsv", normed, lm_head_weight.astype(jnp.float32))


if __name__ == "__main__":
    # Small, deterministic synthetic setup (no checkpoint loading).
    BATCH = 2
    SEQ = 8
    HIDDEN = 128
    VOCAB = 256
    EPS = 1e-5

    key = jax.random.PRNGKey(0)
    k_h, k_g, k_w = jax.random.split(key, 3)

    hidden = jax.random.normal(k_h, (BATCH, SEQ, HIDDEN), dtype=jnp.float32)
    norm_w = 1.0 + 0.1 * jax.random.normal(k_g, (HIDDEN,), dtype=jnp.float32)
    head_w = jax.random.normal(k_w, (VOCAB, HIDDEN), dtype=jnp.float32) * 0.02

    # One-time weight prep (per checkpoint, not per call).  block_n=128 and
    # block_m=8 give a 2x2 grid at these tiny shapes so both index maps get
    # exercised; at Llama-3.1 scale use the defaults (block_n=768, block_m=128).
    w_prepped, tn = prepare_lm_head_weight(norm_w, head_w, block_n=128)

    logits = lm_head(hidden, w_prepped, vocab_size=VOCAB, block_n=tn,
                     eps=EPS, block_m=8)
    logits = jax.block_until_ready(logits)

    ref = _reference(hidden, norm_w, head_w, EPS)
    assert logits.shape == (BATCH, SEQ, VOCAB)
    assert logits.dtype == jnp.float32
    # bf16 MXU operands (f32 accumulation) vs the pure-f32 reference.
    max_err = float(jnp.max(jnp.abs(logits - ref)))
    assert jnp.allclose(logits, ref, atol=2e-2, rtol=2e-2), max_err

    print("KERNEL_OK")
</pallas_src>

<mosaic_0001>
module attributes {stable_mosaic.version = 11 : i64} {
  func.func @_lmhead_kernel(%arg0: i32, %arg1: i32, %arg2: memref<8x128xf32, #tpu.memory_space<vmem>>, %arg3: memref<128x128xbf16, #tpu.memory_space<vmem>>, %arg4: memref<8x128xf32, #tpu.memory_space<vmem>>) attributes {dimension_semantics = [#tpu.dimension_semantics<parallel>, #tpu.dimension_semantics<parallel>], iteration_bounds = array<i64: 2, 2>, scalar_prefetch = 0 : i64, scratch_operands = 0 : i64, tpu.core_type = #tpu.core_type<tc>, window_params = [{transform_indices = @transform_0, window_bounds = array<i64: 8, 128>}, {transform_indices = @transform_1, window_bounds = array<i64: 128, 128>}, {transform_indices = @transform_2, window_bounds = array<i64: 8, 128>}]} {
    %c0 = arith.constant 0 : index
    %c0_0 = arith.constant 0 : index
    %0 = vector.load %arg2[%c0, %c0_0] : memref<8x128xf32, #tpu.memory_space<vmem>>, vector<8x128xf32>
    %1 = arith.mulf %0, %0 : vector<8x128xf32>
    %cst = arith.constant dense<0.000000e+00> : vector<8xf32>
    %2 = vector.multi_reduction <add>, %1, %cst [1] : vector<8x128xf32> to vector<8xf32>
    %3 = vector.shape_cast %2 : vector<8xf32> to vector<8x1xf32>
    %cst_1 = arith.constant 1.280000e+02 : f32
    %4 = vector.broadcast %cst_1 : f32 to vector<8x1xf32>
    %5 = arith.divf %3, %4 : vector<8x1xf32>
    %cst_2 = arith.constant 9.99999974E-6 : f32
    %6 = vector.broadcast %cst_2 : f32 to vector<8x1xf32>
    %7 = arith.addf %5, %6 : vector<8x1xf32>
    %8 = math.rsqrt %7 : vector<8x1xf32>
    %9 = vector.broadcast %8 : vector<8x1xf32> to vector<8x128xf32>
    %10 = arith.mulf %0, %9 : vector<8x128xf32>
    %11 = arith.truncf %10 : vector<8x128xf32> to vector<8x128xbf16>
    %c0_3 = arith.constant 0 : index
    %c0_4 = arith.constant 0 : index
    %12 = vector.load %arg3[%c0_3, %c0_4] : memref<128x128xbf16, #tpu.memory_space<vmem>>, vector<128x128xbf16>
    %cst_5 = arith.constant dense<0.000000e+00> : vector<8x128xf32>
    %13 = tpu.matmul %11, %12, %cst_5 {dimension_numbers = #tpu.dot_dimension_numbers<[1], [0], [0], [1], [0, 0, 1, 1], [], []>} : vector<8x128xbf16>, vector<128x128xbf16>, vector<8x128xf32> -> vector<8x128xf32>
    %c0_6 = arith.constant 0 : index
    %c0_7 = arith.constant 0 : index
    %14 = vector.load %arg4[%c0_6, %c0_7] : memref<8x128xf32, #tpu.memory_space<vmem>>, vector<8x128xf32>
    tpu.vector_store %arg4[%c0_6, %c0_7], %13 {strides = array<i32>} : memref<8x128xf32, #tpu.memory_space<vmem>>, vector<8x128xf32>,
    return
  }
  func.func @transform_0(%arg0: i32, %arg1: i32) -> (i32, i32) {
    %c0_i32 = arith.constant 0 : i32
    %c0_i32_0 = arith.constant 0 : i32
    return %arg1, %c0_i32 : i32, i32
  }
  func.func @transform_1(%arg0: i32, %arg1: i32) -> (i32, i32) {
    %c0_i32 = arith.constant 0 : i32
    %c0_i32_0 = arith.constant 0 : i32
    return %c0_i32, %arg0 : i32, i32
  }
  func.func @transform_2(%arg0: i32, %arg1: i32) -> (i32, i32) {
    %c0_i32 = arith.constant 0 : i32
    return %arg1, %arg0 : i32, i32
  }
}

</mosaic_0001>

<llo_original>
// kernel: tpu_custom_call.1
$region0: #{tpu_custom_call.1}
  #allocation0 [shape = 'u32[]', space=smem, size = 0x4, offset = 0x4, fixed_abs, tag = 'smem constant byte address 0x4 - core index']
  #allocation1 [shape = 'u32[144,128]{1,0:T(1,128)}', space=vmem, size = 0x12000, scoped, tag = 'internal scratch']
  %s0 = inlined_call_operand.hbm [shape: f32[16,128], index: 0, kind: input, shape index: {}]
  %s1 = inlined_call_operand.hbm [shape: bf16[128,256], index: 1, kind: input, shape index: {}]
  %s2 = inlined_call_operand.hbm [shape: f32[16,256], index: 2, kind: output, shape index: {}]
  %s3 = sld [smem:[#allocation0]]
  $region49: #{tpu_custom_call.1} parent=0
    _
  %s5 = ssub.s32 1, %s3
  %s6 = scalar_select 0, %s5, %s3
  $region1: #{tpu_custom_call.1} parent=0
    #allocation2 [shape = 'u8[8192]{0}', space=vmem, size = 0x2000, scoped, tag = 'input window, operand 0']
    #allocation3 [shape = 's32[2]{0}', space=sflag, size = 0x8, scoped, tag = 'scoped memory for tpu_custom_call.1']
    #allocation4 [shape = 's32[2]{0}', space=sflag, size = 0x8, scoped, tag = 'scoped memory for tpu_custom_call.1']
    #allocation5 [shape = 'u8[65536]{0}', space=vmem, size = 0x10000, scoped, tag = 'input window, operand 1']
    #allocation6 [shape = 's32[2]{0}', space=sflag, size = 0x8, scoped, tag = 'scoped memory for tpu_custom_call.1']
    #allocation7 [shape = 'u8[8192]{0}', space=vmem, size = 0x2000, scoped, tag = 'output window, operand 0']
    %7 = vsyncpa [#allocation3], 0
    %s8 = scalar_lea.sflag [#allocation3], 1
    %9 = vsyncpa %s8, 0
    %10 = vsyncpa [#allocation6], 0
    %s11 = scalar_lea.sflag [#allocation6], 1
    %12 = vsyncpa %s11, 0
    %13 = vsyncpa [#allocation4], 0
    %s14 = scalar_lea.sflag [#allocation4], 1
    %15 = vsyncpa %s14, 0
    loop: start=0, step=1, limit=6
    $region2: #{tpu_custom_call.1} parent=1 // loop_pre_header
      _
    $region3: #{tpu_custom_call.1} parent=1 // loop_header
      %s17 = sphi 0, %s21
      %p18 = scmp.ge.s32.totalorder %s17, 6
      %s24 = sphi 0, %s36
      %s25 = sphi 0, %s32
      %s26 = sphi 0, %s24
      %s27 = sphi 0, %s25
      %s28 = sphi 0, %s26
      %s29 = sphi 0, %s27
      %s39 = sphi 0, %s41
      %s42 = sphi 0, %s39
      %s43 = sphi 0, %s42
      %s59 = sphi 0, %s43
      %s65 = sphi 0, %s67
      %s68 = sphi 0, %s65
      %s69 = sphi 0, %s68
      %s85 = sphi 0, %s69
      %s93 = sphi 0, %s95
      %s96 = sphi 0, %s93
      %s97 = sphi 0, %s96
      %s113 = sphi 0, %s97
    $region4: #{tpu_custom_call.1} parent=1 // loop_header_branch
      %20 = sbr.rel (%p18) target = $region8
    $region5: #{tpu_custom_call.1} parent=1 // loop_body
      %s22 = ssub.s32 %s17, 1
      %s23 = ssub.s32 %s17, 2
      %s30 = sadd.s32 1, %s25
      %p31 = scmp.ge.s32.totalorder %s30, 2
      %s32 = scalar_select %p31, 0, %s30
      %s33 = sadd.s32 1, %s24
      %s34 = scalar_select %p31, %s33, %s24
      %p35 = scmp.ge.s32.totalorder %s34, 2
      %s36 = scalar_select %p35, 0, %s34
      %s37 = ssub.s32 %s25, %s32
      %p38 = scmp.eq.s32.totalorder %s37, 0
      %s40 = sadd.s32 %s39, 1
      %s41 = scalar_select %p38, %s39, %s40
      %p44 = pneg %p38
      %p45 = scmp.eq.s32.totalorder %s17, 3
      %p46 = por %p44, %p45
      %p47 = scmp.ne.s32.totalorder %s39, %s42
      %p48 = scmp.eq.s32.totalorder %s17, 0
      %p49 = por %p47, %p48
      %p50 = scmp.ne.s32.totalorder %s39, %s42
      %p51 = scmp.eq.s32.totalorder %s22, 3
      %p52 = por %p50, %p51
      %p53 = scmp.ne.s32.totalorder %s42, %s43
      %p54 = scmp.eq.s32.totalorder %s22, 0
      %p55 = por %p53, %p54
      %p56 = scmp.ne.s32.totalorder %s42, %s43
      %p57 = scmp.eq.s32.totalorder %s23, 3
      %p58 = por %p56, %p57
      %p60 = scmp.ne.s32.totalorder %s43, %s59
      %p61 = scmp.eq.s32.totalorder %s23, 0
      %p62 = por %p60, %p61
      %s63 = ssub.s32 %s24, %s36
      %p64 = scmp.eq.s32.totalorder %s63, 0
      %s66 = sadd.s32 %s65, 1
      %s67 = scalar_select %p64, %s65, %s66
      %p70 = pneg %p64
      %p71 = scmp.eq.s32.totalorder %s17, 3
      %p72 = por %p70, %p71
      %p73 = scmp.ne.s32.totalorder %s65, %s68
      %p74 = scmp.eq.s32.totalorder %s17, 0
      %p75 = por %p73, %p74
      %p76 = scmp.ne.s32.totalorder %s65, %s68
      %p77 = scmp.eq.s32.totalorder %s22, 3
      %p78 = por %p76, %p77
      %p79 = scmp.ne.s32.totalorder %s68, %s69
      %p80 = scmp.eq.s32.totalorder %s22, 0
      %p81 = por %p79, %p80
      %p82 = scmp.ne.s32.totalorder %s68, %s69
      %p83 = scmp.eq.s32.totalorder %s23, 3
      %p84 = por %p82, %p83
      %p86 = scmp.ne.s32.totalorder %s69, %s85
      %p87 = scmp.eq.s32.totalorder %s23, 0
      %p88 = por %p86, %p87
      %s89 = ssub.s32 %s25, %s32
      %s90 = ssub.s32 %s24, %s36
      %s91 = sor.u32 %s89, %s90
      %p92 = scmp.eq.s32.totalorder %s91, 0
      %s94 = sadd.s32 %s93, 1
      %s95 = scalar_select %p92, %s93, %s94
      %p98 = pneg %p92
      %p99 = scmp.eq.s32.totalorder %s17, 3
      %p100 = por %p98, %p99
      %p101 = scmp.ne.s32.totalorder %s93, %s96
      %p102 = scmp.eq.s32.totalorder %s17, 0
      %p103 = por %p101, %p102
      %p104 = scmp.ne.s32.totalorder %s93, %s96
      %p105 = scmp.eq.s32.totalorder %s22, 3
      %p106 = por %p104, %p105
      %p107 = scmp.ne.s32.totalorder %s96, %s97
      %p108 = scmp.eq.s32.totalorder %s22, 0
      %p109 = por %p107, %p108
      %p110 = scmp.ne.s32.totalorder %s96, %s97
      %p111 = scmp.eq.s32.totalorder %s23, 3
      %p112 = por %p110, %p111
      %p114 = scmp.ne.s32.totalorder %s97, %s113
      %p115 = scmp.eq.s32.totalorder %s23, 0
      %p116 = por %p114, %p115
      %p117 = scmp.le.s32.totalorder 1, %s17
      %p118 = scmp.lt.s32.totalorder %s17, 5
      %p119 = pnand %p117, %p118
      %p120 = pneg %p119
      // Predicated region
      $region9: #{tpu_custom_call.1} parent=5 // pred_check
        _
      $region10: #{tpu_custom_call.1} parent=5 // pred_check_branch
        %122 = sbr.rel (%p119) target = $region12
      $region11: #{tpu_custom_call.1} parent=5 // pred_region
        %s123 = ssub.s32 %s17, 1
      $region12: #{tpu_custom_call.1} parent=5 // pred_fallthru
        _
      %p124 = scmp.lt.s32.totalorder %s17, 4
      // Predicated region
      $region13: #{tpu_custom_call.1} parent=5 // pred_check
        %p125 = pneg %p124
      $region14: #{tpu_custom_call.1} parent=5 // pred_check_branch
        %127 = sbr.rel (%p125) target = $region16
      $region15: #{tpu_custom_call.1} parent=5 // pred_region
        // Predicated region
        $region17: #{tpu_custom_call.1} parent=15 // pred_check
          %p128 = pneg %p49
        $region18: #{tpu_custom_call.1} parent=15 // pred_check_branch
          %130 = sbr.rel (%p128) target = $region20
        $region19: #{tpu_custom_call.1} parent=15 // pred_region
          %s131 = sand.u32 %s39, 1
          %s132 = scalar_lea.sflag [#allocation3], %s131
          %s133 = sand.u32 %s39, 1
          %s134 = smul.addr %s133, 8
          %s135 = scalar_lea.vmem [#allocation2], %s134
          %s137 = ssub.s32 128, 128
          %138 = vsyncadd %s132, %s137
          %s139 = smul.addr %s25, 128
          %s140 = scalar_lea.hbm %s0, %s139
          %s142 = sshll.u32 %s135, 4
          %s143 = int_to_ptr.vmem [resolvable:$true] %s142
          %145 = dma.hbm_to_vmem [thread:$0]  %s140, 128, %s143, %s132
        $region20: #{tpu_custom_call.1} parent=15 // pred_fallthru
          _
        // Predicated region
        $region21: #{tpu_custom_call.1} parent=15 // pred_check
          %p146 = pneg %p75
        $region22: #{tpu_custom_call.1} parent=15 // pred_check_branch
          %148 = sbr.rel (%p146) target = $region24
        $region23: #{tpu_custom_call.1} parent=15 // pred_region
          %s149 = sand.u32 %s65, 1
          %s150 = scalar_lea.sflag [#allocation6], %s149
          %s151 = sand.u32 %s65, 1
          %s152 = smul.addr %s151, 64
          %s153 = scalar_lea.vmem [#allocation5], %s152
          %s155 = ssub.s32 1024, 1024
          %156 = vsyncadd %s150, %s155
          %s157 = smul.addr %s24, 64
          %s158 = scalar_lea.hbm %s1, %s157
          %s159 = sshll.u32 %s153, 4
          %s160 = int_to_ptr.vmem [resolvable:$true] %s159
          %165 = dma.hbm_to_vmem [thread:$0]  %s158, 1024, %s160, %s150, 128, 64, 4
        $region24: #{tpu_custom_call.1} parent=15 // pred_fallthru
          _
      $region16: #{tpu_custom_call.1} parent=5 // pred_fallthru
        _
      %p166 = scmp.le.s32.totalorder 1, %s17
      %p167 = scmp.lt.s32.totalorder %s17, 5
      %p168 = pnand %p166, %p167
      %p169 = pneg %p168
      // Predicated region
      $region25: #{tpu_custom_call.1} parent=5 // pred_check
        _
      $region26: #{tpu_custom_call.1} parent=5 // pred_check_branch
        %171 = sbr.rel (%p168) target = $region28
      $region27: #{tpu_custom_call.1} parent=5 // pred_region
        %s172 = ssub.s32 %s17, 1
        %s173 = sand.u32 %s42, 1
        %s174 = scalar_lea.sflag [#allocation3], %s173
        %s175 = sand.u32 %s42, 1
        %s176 = smul.addr %s175, 8
        %s177 = scalar_lea.vmem [#allocation2], %s176
        // Predicated region
        $region29: #{tpu_custom_call.1} parent=27 // pred_check
          %p178 = pneg %p55
        $region30: #{tpu_custom_call.1} parent=27 // pred_check_branch
          %180 = sbr.rel (%p178) target = $region32
        $region31: #{tpu_custom_call.1} parent=27 // pred_region
          %181 = dma.done %s174, 128
        $region32: #{tpu_custom_call.1} parent=27 // pred_fallthru
          _
        %s182 = sand.u32 %s68, 1
        %s183 = scalar_lea.sflag [#allocation6], %s182
        %s184 = sand.u32 %s68, 1
        %s185 = smul.addr %s184, 64
        %s186 = scalar_lea.vmem [#allocation5], %s185
        // Predicated region
        $region33: #{tpu_custom_call.1} parent=27 // pred_check
          %p187 = pneg %p81
        $region34: #{tpu_custom_call.1} parent=27 // pred_check_branch
          %189 = sbr.rel (%p187) target = $region36
        $region35: #{tpu_custom_call.1} parent=27 // pred_region
          %190 = dma.done %s183, 1024
        $region36: #{tpu_custom_call.1} parent=27 // pred_fallthru
          _
        %s191 = sand.u32 %s42, 1
        %s192 = scalar_lea.sflag [#allocation3], %s191
        %s193 = sand.u32 %s42, 1
        %s194 = smul.addr %s193, 8
        %s195 = scalar_lea.vmem [#allocation2], %s194
        %p196 = pneg %p55
        %p197 = pneg %p52
        %s198 = sand.u32 %s68, 1
        %s199 = scalar_lea.sflag [#allocation6], %s198
        %s200 = sand.u32 %s68, 1
        %s201 = smul.addr %s200, 64
        %s202 = scalar_lea.vmem [#allocation5], %s201
        %p203 = pneg %p81
        %p204 = pneg %p78
        %p205 = pneg %p109
        %p206 = pneg %p106
        %s207 = sand.u32 %s96, 1
        %s208 = scalar_lea.sflag [#allocation4], %s207
        %s209 = sand.u32 %s96, 1
        %s210 = smul.addr %s209, 8
        %s211 = scalar_lea.vmem [#allocation7], %s210
        %v213 = vld [vmem:[%s177] sm:$0xff]
        %v214 = vmul.f32 %v213, %v213
        %215 = vadd.xlane.f32.xlu0 %v214
        %v216 = vpop.xlane.xlu0 %215
        %v217 = vrcp.pop 128.0
        %v218 = vmul.f32 %v216, %v217
        %v219 = vadd.f32 %v218, 1e-05
        %v220 = vrsqrt.pop %v219
        %v221 = vmul.f32 %v213, %v220
        %v222 = vpack.c.bf16 %v221, %v221
        %v223 = vld [vmem:[%s186] sm:$0xf]
        %v224 = vld [vmem:[%s186 + $0x4] sm:$0xf]
        %v225 = vld [vmem:[%s186 + $0x8] sm:$0xf]
        %v226 = vld [vmem:[%s186 + $0xc] sm:$0xf]
        %v227 = vld [vmem:[%s186 + $0x10] sm:$0xf]
        %v228 = vld [vmem:[%s186 + $0x14] sm:$0xf]
        %v229 = vld [vmem:[%s186 + $0x18] sm:$0xf]
        %v230 = vld [vmem:[%s186 + $0x1c] sm:$0xf]
        %v231 = vld [vmem:[%s186 + $0x20] sm:$0xf]
        %v232 = vld [vmem:[%s186 + $0x24] sm:$0xf]
        %v233 = vld [vmem:[%s186 + $0x28] sm:$0xf]
        %v234 = vld [vmem:[%s186 + $0x2c] sm:$0xf]
        %v235 = vld [vmem:[%s186 + $0x30] sm:$0xf]
        %v236 = vld [vmem:[%s186 + $0x34] sm:$0xf]
        %v237 = vld [vmem:[%s186 + $0x38] sm:$0xf]
        %v238 = vld [vmem:[%s186 + $0x3c] sm:$0xf]
        %v255 = vunpack.c.l.b16 %v223
        %v256 = vunpack.c.l.b16 %v224
        %v257 = vunpack.c.l.b16 %v225
        %v258 = vunpack.c.l.b16 %v226
        %v259 = vunpack.c.l.b16 %v227
        %v260 = vunpack.c.l.b16 %v228
        %v261 = vunpack.c.l.b16 %v229
        %v262 = vunpack.c.l.b16 %v230
        %v263 = vunpack.c.l.b16 %v231
        %v264 = vunpack.c.l.b16 %v232
        %v265 = vunpack.c.l.b16 %v233
        %v266 = vunpack.c.l.b16 %v234
        %v267 = vunpack.c.l.b16 %v235
        %v268 = vunpack.c.l.b16 %v236
        %v269 = vunpack.c.l.b16 %v237
        %v270 = vunpack.c.l.b16 %v238
        %v271 = vpack.c.b16 %v256, %v255
        %v272 = vpack.c.b16 %v258, %v257
        %v273 = vpack.c.b16 %v260, %v259
        %v274 = vpack.c.b16 %v262, %v261
        %v275 = vpack.c.b16 %v264, %v263
        %v276 = vpack.c.b16 %v266, %v265
        %v277 = vpack.c.b16 %v268, %v267
        %v278 = vpack.c.b16 %v270, %v269
        %287 = vmatprep.subr.bf16.mxu0 0
        %288 = vmatpush1.bf16.msra.mxu0 %v278
        %289 = vmatprep.subr.bf16.mxu0 0
        %290 = vmatpush1.bf16.msra.mxu0 %v277
        %291 = vmatprep.subr.bf16.mxu0 0
        %292 = vmatpush1.bf16.msra.mxu0 %v276
        %293 = vmatprep.subr.bf16.mxu0 0
        %294 = vmatpush1.bf16.msra.mxu0 %v275
        %295 = vmatprep.subr.bf16.mxu0 0
        %296 = vmatpush1.bf16.msra.mxu0 %v274
        %297 = vmatprep.subr.bf16.mxu0 0
        %298 = vmatpush1.bf16.msra.mxu0 %v273
        %299 = vmatprep.subr.bf16.mxu0 0
        %300 = vmatpush1.bf16.msra.mxu0 %v272
        %301 = vmatprep.subr.bf16.mxu0 0
        %302 = vmatpush1.bf16.msra.mxu0 %v271
        %303 = vmatprep.subr.bf16.mxu0 0
        %304 = vmatpush2.bf16.msra.mxu0 0
        %305 = vmatprep.subr.bf16.mxu0 0
        %306 = vmatpush2.bf16.msra.mxu0 0
        %307 = vmatprep.subr.bf16.mxu0 0
        %308 = vmatpush2.bf16.msra.mxu0 0
        %309 = vmatprep.subr.bf16.mxu0 0
        %310 = vmatpush2.bf16.msra.mxu0 0
        %311 = vmatprep.subr.bf16.mxu0 0
        %312 = vmatpush2.bf16.msra.mxu0 0
        %313 = vmatprep.subr.bf16.mxu0 0
        %314 = vmatpush2.bf16.msra.mxu0 0
        %315 = vmatprep.subr.bf16.mxu0 0
        %316 = vmatpush2.bf16.msra.mxu0 0
        %317 = vmatprep.subr.bf16.mxu0 0
        %318 = vmatpush2.bf16.msra.mxu0 0
        %319 = vmatprep.mubr.bf16.mxu0 0
        %320 = vmatmul.mubr.bf16.gmra.mxu0 %v222
        %v321 = vpop.f32.mrf.mxu0
        %v322 = vadd.f32 0.0, %v321
        %v323 = vpop.f32.mrf.mxu0
        %v324 = vpop.f32.mrf.mxu0
        %v325 = vpop.f32.mrf.mxu0
        %326 = vdwg.mxu0
        %327 = vst [vmem:[%s211] sm:$0xff] %v322
        %s328 = sand.u32 %s96, 1
        %s329 = scalar_lea.sflag [#allocation4], %s328
        %s330 = sand.u32 %s96, 1
        %s331 = smul.addr %s330, 8
        %s332 = scalar_lea.vmem [#allocation7], %s331
        // Predicated region
        $region37: #{tpu_custom_call.1} parent=27 // pred_check
          %p333 = pneg %p106
        $region38: #{tpu_custom_call.1} parent=27 // pred_check_branch
          %335 = sbr.rel (%p333) target = $region40
        $region39: #{tpu_custom_call.1} parent=27 // pred_region
          %s337 = ssub.s32 128, 128
          %338 = vsyncadd %s329, %s337
          %s339 = smul.addr %s27, 2
          %s340 = sadd.s32 %s26, %s339
          %s341 = smul.addr %s340, 128
          %s342 = scalar_lea.hbm %s2, %s341
          %s344 = sshll.u32 %s332, 4
          %s345 = int_to_ptr.vmem [resolvable:$true] %s344
          %347 = dma.vmem_to_hbm [thread:$0]  %s345, 128, %s342, %s329
        $region40: #{tpu_custom_call.1} parent=27 // pred_fallthru
          _
      $region28: #{tpu_custom_call.1} parent=5 // pred_fallthru
        _
      %p348 = scmp.le.s32.totalorder 2, %s17
      // Predicated region
      $region41: #{tpu_custom_call.1} parent=5 // pred_check
        %p349 = pneg %p348
      $region42: #{tpu_custom_call.1} parent=5 // pred_check_branch
        %351 = sbr.rel (%p349) target = $region44
      $region43: #{tpu_custom_call.1} parent=5 // pred_region
        %s352 = ssub.s32 %s17, 2
        // Predicated region
        $region45: #{tpu_custom_call.1} parent=43 // pred_check
          %p353 = pneg %p112
        $region46: #{tpu_custom_call.1} parent=43 // pred_check_branch
          %355 = sbr.rel (%p353) target = $region48
        $region47: #{tpu_custom_call.1} parent=43 // pred_region
          %s356 = sand.u32 %s97, 1
          %s357 = scalar_lea.sflag [#allocation4], %s356
          %s358 = sand.u32 %s97, 1
          %s359 = smul.addr %s358, 8
          %s360 = scalar_lea.vmem [#allocation7], %s359
          %361 = dma.done %s357, 128
        $region48: #{tpu_custom_call.1} parent=43 // pred_fallthru
          _
      $region44: #{tpu_custom_call.1} parent=5 // pred_fallthru
        _
    $region6: #{tpu_custom_call.1} parent=1 // loop_footer
      %s21 = sadd.s32 1, %s17
    $region7: #{tpu_custom_call.1} parent=1 // loop_footer_branch
      %16 = sbr.rel target = $region3
    $region8: #{tpu_custom_call.1} parent=1 // loop_exit
      _
    %362 = vsyncpa [#allocation3], 1
    %s363 = scalar_lea.sflag [#allocation3], 1
    %364 = vsyncpa %s363, 1
    %365 = vsyncpa [#allocation6], 1
    %s366 = scalar_lea.sflag [#allocation6], 1
    %367 = vsyncpa %s366, 1
    %368 = vsyncpa [#allocation4], 1
    %s369 = scalar_lea.sflag [#allocation4], 1
    %370 = vsyncpa %s369, 1

</llo_original>
